<compile_context>
chip_gen: v5e
topology: v5e:2x2
jax: 0.10.0
libtpu: 0.0.40
codegen_flags: <defaults>
</compile_context>

<pallas_src>
import functools

import jax
import jax.numpy as jnp
from jax.experimental import pallas as pl
from jax.experimental.pallas import tpu as pltpu


def _vmem_limit_bytes():
    """Generation-aware scoped-VMEM budget (~75% of physical capacity)."""
    cap = None
    try:
        cap = getattr(pltpu.get_tpu_info(), "vmem_capacity_bytes", None)
    except Exception:
        cap = None
    if not cap:
        cap = 64 * 1024 * 1024  # conservative fallback (v7x physical size)
    return (int(cap) * 3) // 4  # ~48 MiB on v7x, ~96 MiB on v5e/v6e


def _pick_hw_tile(C, HW, itemsize, vmem_limit, target_block_bytes=2 * 1024 * 1024):
    """Byte-budgeted lane tile: full extent if the row is small, else the
    largest 128-multiple such that one (C, hw_tile) block is ~target bytes and
    pass 2's (x in + out) x 2 double-buffers stay well inside the VMEM budget."""
    per_lane = C * itemsize
    if HW * per_lane <= target_block_bytes:
        return HW
    lanes = max(128, (target_block_bytes // per_lane) // 128 * 128)
    lanes_cap = max(128, ((vmem_limit // 8) // per_lane) // 128 * 128)
    return int(min(lanes, lanes_cap))


def _fused_kernel(x_ref, w1a_ref, w2a_ref, w1m_ref, w2m_ref, o_ref, *, hw_true):
    """Whole-slab path: pool -> MLP -> sigmoid -> scale, one batch per step."""
    x = x_ref[...].astype(jnp.float32)                             # (C, HW)
    avg = jnp.sum(x, axis=-1, keepdims=True) * (1.0 / hw_true)     # (C, 1)
    mx = jnp.max(x, axis=-1, keepdims=True)                        # (C, 1)
    h_a = jnp.maximum(
        jnp.dot(w1a_ref[...], avg, preferred_element_type=jnp.float32), 0.0)
    h_m = jnp.maximum(
        jnp.dot(w1m_ref[...], mx, preferred_element_type=jnp.float32), 0.0)
    out = (jnp.dot(w2a_ref[...], h_a, preferred_element_type=jnp.float32)
           + jnp.dot(w2m_ref[...], h_m, preferred_element_type=jnp.float32))
    scale = jax.nn.sigmoid(out)                                    # (C, 1) f32
    o_ref[...] = (x * scale).astype(o_ref.dtype)


def _pool_kernel(x_ref, sum_ref, max_ref, sum_acc, max_acc, *,
                 hw_true, hw_tile, acc_w, n_hw, needs_mask):
    """Streaming pooling: lane-wide elementwise sum/max accumulation into
    (C, acc_w) f32 scratch; single cross-lane reduce at the last HW step."""
    hw_idx = pl.program_id(1)
    n_chunks = hw_tile // acc_w

    @pl.when(hw_idx == 0)
    def _init():
        sum_acc[...] = jnp.zeros(sum_acc.shape, dtype=sum_acc.dtype)
        max_acc[...] = jnp.full(max_acc.shape, -jnp.inf, dtype=max_acc.dtype)

    def accumulate(masked):
        s = sum_acc[...]
        m = max_acc[...]
        rem = hw_true - (n_hw - 1) * hw_tile if masked else hw_tile
        for j in range(n_chunks):
            lo = j * acc_w
            if masked and lo >= rem:
                break                     # chunk lies entirely in the padding
            chunk = x_ref[:, lo:lo + acc_w].astype(jnp.float32)   # (C, acc_w)
            if masked and lo + acc_w > rem:
                col = jax.lax.broadcasted_iota(jnp.int32, chunk.shape, 1)
                valid = col < (rem - lo)
                s = s + jnp.where(valid, chunk, 0.0)
                m = jnp.maximum(m, jnp.where(valid, chunk, -jnp.inf))
            else:
                s = s + chunk
                m = jnp.maximum(m, chunk)
        sum_acc[...] = s
        max_acc[...] = m

    if needs_mask:
        # Only the boundary tile pays the iota/compare/select mask cost.
        @pl.when(hw_idx < n_hw - 1)
        def _interior():
            accumulate(masked=False)

        @pl.when(hw_idx == n_hw - 1)
        def _boundary():
            accumulate(masked=True)
    else:
        accumulate(masked=False)

    @pl.when(hw_idx == n_hw - 1)
    def _finalize():
        sum_ref[...] = jnp.sum(sum_acc[...], axis=-1, keepdims=True)  # (C, 1)
        max_ref[...] = jnp.max(max_acc[...], axis=-1, keepdims=True)  # (C, 1)


def _apply_scale_kernel(x_ref, s_ref, o_ref):
    """out = x * scale (broadcast over HW); product in f32, cast at the store."""
    x = x_ref[...].astype(jnp.float32)            # (C, hw_tile)
    o_ref[...] = (x * s_ref[...]).astype(o_ref.dtype)


def channel_attention(x, w1a, w2a, w1m, w2m, *, hw_tile=None, force_two_pass=False):
    """CBAM ChannelAttention forward.

    x: (B, C, H, W) NCHW.  w1a/w1m: (C//r, C), w2a/w2m: (C, C//r) -- the 1x1
    convs (bias=False) squeezed from (out, in, 1, 1) to (out, in).
    """
    B, C, H, W = x.shape
    HW = H * W
    Cr = w1a.shape[0]
    itemsize = jnp.dtype(x.dtype).itemsize
    vmem_limit = _vmem_limit_bytes()

    x2 = x.reshape(B, C, HW)

    # ---- Fused single-pass path: per-batch slab + weights fit VMEM. ----
    w_bytes = sum(int(w.size) * jnp.dtype(w.dtype).itemsize
                  for w in (w1a, w2a, w1m, w2m))
    # x block + out block (double-buffered) + an f32 temp slab + weights x2.
    fused_need = 4 * C * HW * itemsize + 4 * C * HW + 2 * w_bytes + (256 << 10)
    use_fused = (not force_two_pass) and hw_tile is None and fused_need <= vmem_limit

    if use_fused:
        out = pl.pallas_call(
            functools.partial(_fused_kernel, hw_true=HW),
            out_shape=jax.ShapeDtypeStruct((B, C, HW), x.dtype),
            grid=(B,),
            in_specs=[
                pl.BlockSpec((None, C, HW), lambda b: (b, 0, 0)),
                pl.BlockSpec((Cr, C), lambda b: (0, 0)),
                pl.BlockSpec((C, Cr), lambda b: (0, 0)),
                pl.BlockSpec((Cr, C), lambda b: (0, 0)),
                pl.BlockSpec((C, Cr), lambda b: (0, 0)),
            ],
            out_specs=pl.BlockSpec((None, C, HW), lambda b: (b, 0, 0)),
            compiler_params=pltpu.CompilerParams(
                dimension_semantics=("parallel",),
                vmem_limit_bytes=vmem_limit),
        )(x2, w1a, w2a, w1m, w2m)
        return out.reshape(B, C, H, W)

    # ---- Two-pass streaming path. ----
    if hw_tile is None:
        hw_tile = _pick_hw_tile(C, HW, itemsize, vmem_limit)
    n_hw = pl.cdiv(HW, hw_tile)
    needs_mask = (HW % hw_tile) != 0
    acc_w = 128 if (hw_tile % 128 == 0) else hw_tile

    pool_kernel = functools.partial(
        _pool_kernel, hw_true=HW, hw_tile=hw_tile, acc_w=acc_w, n_hw=n_hw,
        needs_mask=needs_mask)

    # Pass 1: streaming pooled reductions -> per-batch (C, 1) sum / max.
    sums, maxes = pl.pallas_call(
        pool_kernel,
        out_shape=(jax.ShapeDtypeStruct((B, C, 1), jnp.float32),
                   jax.ShapeDtypeStruct((B, C, 1), jnp.float32)),
        grid=(B, n_hw),
        in_specs=[pl.BlockSpec((None, C, hw_tile), lambda b, h: (b, 0, h))],
        out_specs=[pl.BlockSpec((None, C, 1), lambda b, h: (b, 0, 0)),
                   pl.BlockSpec((None, C, 1), lambda b, h: (b, 0, 0))],
        scratch_shapes=[pltpu.VMEM((C, acc_w), jnp.float32),
                        pltpu.VMEM((C, acc_w), jnp.float32)],
        compiler_params=pltpu.CompilerParams(
            dimension_semantics=("parallel", "arbitrary"),
            vmem_limit_bytes=vmem_limit),
    )(x2)

    # Tiny MLP + sigmoid wrapper-side: one real batched matmul per branch; no
    # weight operands or degenerate N=1 MXU matmuls inside the streaming pass.
    f32 = jnp.float32
    avg = sums[:, :, 0] * (1.0 / HW)                         # (B, C) f32
    mx = maxes[:, :, 0]                                      # (B, C) f32
    avg_out = jnp.maximum(avg @ w1a.astype(f32).T, 0.0) @ w2a.astype(f32).T
    max_out = jnp.maximum(mx @ w1m.astype(f32).T, 0.0) @ w2m.astype(f32).T
    scale = jax.nn.sigmoid(avg_out + max_out)[:, :, None]    # (B, C, 1) f32

    # Pass 2: fully parallel, lane-dense elementwise scaling.
    out = pl.pallas_call(
        _apply_scale_kernel,
        out_shape=jax.ShapeDtypeStruct((B, C, HW), x.dtype),
        grid=(B, n_hw),
        in_specs=[
            pl.BlockSpec((None, C, hw_tile), lambda b, h: (b, 0, h)),
            pl.BlockSpec((None, C, 1), lambda b, h: (b, 0, 0)),
        ],
        out_specs=pl.BlockSpec((None, C, hw_tile), lambda b, h: (b, 0, h)),
        compiler_params=pltpu.CompilerParams(
            dimension_semantics=("parallel", "parallel"),
            vmem_limit_bytes=vmem_limit),
    )(x2, scale)

    return out.reshape(B, C, H, W)


def _reference(x, w1a, w2a, w1m, w2m):
    # Pure-JAX reference mirroring the PyTorch forward.
    avg = jnp.mean(x, axis=(2, 3))                           # (B, C)
    mx = jnp.max(x, axis=(2, 3))                             # (B, C)
    avg_out = jnp.maximum(avg @ w1a.T, 0.0) @ w2a.T          # (B, C)
    max_out = jnp.maximum(mx @ w1m.T, 0.0) @ w2m.T           # (B, C)
    scale = jax.nn.sigmoid(avg_out + max_out)[:, :, None, None]
    return x * scale


if __name__ == "__main__":
    def run_case(B, C, H, W, ratio, key, hw_tile=None, force_two_pass=False):
        Cr = C // ratio
        kx, k1, k2, k3, k4 = jax.random.split(key, 5)
        x = jax.random.normal(kx, (B, C, H, W), dtype=jnp.float32)
        # Deterministic synthetic 1x1-conv weights (bias=False), squeezed from
        # Conv2d shape (out, in, 1, 1) to (out, in).
        w1a = jax.random.normal(k1, (Cr, C), dtype=jnp.float32) / jnp.sqrt(C)
        w2a = jax.random.normal(k2, (C, Cr), dtype=jnp.float32) / jnp.sqrt(Cr)
        w1m = jax.random.normal(k3, (Cr, C), dtype=jnp.float32) / jnp.sqrt(C)
        w2m = jax.random.normal(k4, (C, Cr), dtype=jnp.float32) / jnp.sqrt(Cr)

        out = channel_attention(x, w1a, w2a, w1m, w2m,
                                hw_tile=hw_tile, force_two_pass=force_two_pass)
        out = jax.block_until_ready(out)
        ref = _reference(x, w1a, w2a, w1m, w2m)
        assert out.shape == x.shape
        err = jnp.max(jnp.abs(out - ref))
        assert jnp.allclose(out, ref, atol=1e-5, rtol=1e-4), f"max |err| = {err}"

    key = jax.random.PRNGKey(0)
    k_fused, k_stream, k_ragged = jax.random.split(key, 3)

    # Fused single-pass path (per-batch (C, HW) slab easily fits VMEM).
    run_case(B=2, C=32, H=16, W=16, ratio=8, key=k_fused)

    # Forced two-pass streaming path, aligned HW (2 x 128-lane tiles).
    run_case(B=2, C=32, H=16, W=16, ratio=8, key=k_stream,
             hw_tile=128, force_two_pass=True)

    # Forced two-pass, ragged HW (boundary-tile masking in the pooling pass).
    run_case(B=2, C=32, H=12, W=12, ratio=8, key=k_ragged,
             hw_tile=128, force_two_pass=True)

    print("KERNEL_OK")
</pallas_src>

<mosaic_0001>
module attributes {stable_mosaic.version = 11 : i64} {
  func.func @_fused_kernel(%arg0: i32, %arg1: memref<1x32x256xf32, #tpu.memory_space<vmem>>, %arg2: memref<4x32xf32, #tpu.memory_space<vmem>>, %arg3: memref<32x4xf32, #tpu.memory_space<vmem>>, %arg4: memref<4x32xf32, #tpu.memory_space<vmem>>, %arg5: memref<32x4xf32, #tpu.memory_space<vmem>>, %arg6: memref<1x32x256xf32, #tpu.memory_space<vmem>>) attributes {dimension_semantics = [#tpu.dimension_semantics<parallel>], iteration_bounds = array<i64: 2>, scalar_prefetch = 0 : i64, scratch_operands = 0 : i64, tpu.core_type = #tpu.core_type<tc>, window_params = [{transform_indices = @transform_0, window_bounds = array<i64: 1, 32, 256>}, {pipeline_mode = #tpu.pipeline_mode<synchronous>, transform_indices = @transform_1, window_bounds = array<i64: 4, 32>}, {pipeline_mode = #tpu.pipeline_mode<synchronous>, transform_indices = @transform_2, window_bounds = array<i64: 32, 4>}, {pipeline_mode = #tpu.pipeline_mode<synchronous>, transform_indices = @transform_3, window_bounds = array<i64: 4, 32>}, {pipeline_mode = #tpu.pipeline_mode<synchronous>, transform_indices = @transform_4, window_bounds = array<i64: 32, 4>}, {transform_indices = @transform_5, window_bounds = array<i64: 1, 32, 256>}]} {
    %c0 = arith.constant 0 : index
    %c0_0 = arith.constant 0 : index
    %c0_1 = arith.constant 0 : index
    %0 = vector.load %arg1[%c0, %c0_0, %c0_1] : memref<1x32x256xf32, #tpu.memory_space<vmem>>, vector<1x32x256xf32>
    %1 = vector.shape_cast %0 : vector<1x32x256xf32> to vector<32x256xf32>
    %cst = arith.constant dense<0.000000e+00> : vector<32xf32>
    %2 = vector.multi_reduction <add>, %1, %cst [1] : vector<32x256xf32> to vector<32xf32>
    %3 = vector.shape_cast %2 : vector<32xf32> to vector<32x1xf32>
    %cst_2 = arith.constant 3.906250e-03 : f32
    %4 = vector.broadcast %cst_2 : f32 to vector<32x1xf32>
    %5 = arith.mulf %3, %4 : vector<32x1xf32>
    %cst_3 = arith.constant dense<0xFF800000> : vector<32xf32>
    %6 = vector.multi_reduction <maximumf>, %1, %cst_3 [1] : vector<32x256xf32> to vector<32xf32>
    %7 = vector.shape_cast %6 : vector<32xf32> to vector<32x1xf32>
    %c0_4 = arith.constant 0 : index
    %c0_5 = arith.constant 0 : index
    %8 = vector.load %arg2[%c0_4, %c0_5] : memref<4x32xf32, #tpu.memory_space<vmem>>, vector<4x32xf32>
    %cst_6 = arith.constant dense<0.000000e+00> : vector<4x1xf32>
    %9 = tpu.matmul %8, %5, %cst_6 {dimension_numbers = #tpu.dot_dimension_numbers<[1], [0], [0], [1], [0, 0, 1, 1], [], []>} : vector<4x32xf32>, vector<32x1xf32>, vector<4x1xf32> -> vector<4x1xf32>
    %cst_7 = arith.constant 0.000000e+00 : f32
    %10 = vector.broadcast %cst_7 : f32 to vector<4x1xf32>
    %11 = arith.maximumf %9, %10 : vector<4x1xf32>
    %c0_8 = arith.constant 0 : index
    %c0_9 = arith.constant 0 : index
    %12 = vector.load %arg4[%c0_8, %c0_9] : memref<4x32xf32, #tpu.memory_space<vmem>>, vector<4x32xf32>
    %cst_10 = arith.constant dense<0.000000e+00> : vector<4x1xf32>
    %13 = tpu.matmul %12, %7, %cst_10 {dimension_numbers = #tpu.dot_dimension_numbers<[1], [0], [0], [1], [0, 0, 1, 1], [], []>} : vector<4x32xf32>, vector<32x1xf32>, vector<4x1xf32> -> vector<4x1xf32>
    %cst_11 = arith.constant 0.000000e+00 : f32
    %14 = vector.broadcast %cst_11 : f32 to vector<4x1xf32>
    %15 = arith.maximumf %13, %14 : vector<4x1xf32>
    %c0_12 = arith.constant 0 : index
    %c0_13 = arith.constant 0 : index
    %16 = vector.load %arg3[%c0_12, %c0_13] : memref<32x4xf32, #tpu.memory_space<vmem>>, vector<32x4xf32>
    %cst_14 = arith.constant dense<0.000000e+00> : vector<32x1xf32>
    %17 = tpu.matmul %16, %11, %cst_14 {dimension_numbers = #tpu.dot_dimension_numbers<[1], [0], [0], [1], [0, 0, 1, 1], [], []>} : vector<32x4xf32>, vector<4x1xf32>, vector<32x1xf32> -> vector<32x1xf32>
    %c0_15 = arith.constant 0 : index
    %c0_16 = arith.constant 0 : index
    %18 = vector.load %arg5[%c0_15, %c0_16] : memref<32x4xf32, #tpu.memory_space<vmem>>, vector<32x4xf32>
    %cst_17 = arith.constant dense<0.000000e+00> : vector<32x1xf32>
    %19 = tpu.matmul %18, %15, %cst_17 {dimension_numbers = #tpu.dot_dimension_numbers<[1], [0], [0], [1], [0, 0, 1, 1], [], []>} : vector<32x4xf32>, vector<4x1xf32>, vector<32x1xf32> -> vector<32x1xf32>
    %20 = arith.addf %17, %19 : vector<32x1xf32>
    %21 = arith.negf %20 : vector<32x1xf32>
    %22 = math.exp %21 : vector<32x1xf32>
    %cst_18 = arith.constant 1.000000e+00 : f32
    %23 = vector.broadcast %cst_18 : f32 to vector<32x1xf32>
    %24 = arith.addf %23, %22 : vector<32x1xf32>
    %25 = arith.divf %23, %24 : vector<32x1xf32>
    %26 = vector.broadcast %25 : vector<32x1xf32> to vector<32x256xf32>
    %27 = arith.mulf %1, %26 : vector<32x256xf32>
    %c0_19 = arith.constant 0 : index
    %c0_20 = arith.constant 0 : index
    %c0_21 = arith.constant 0 : index
    %28 = vector.load %arg6[%c0_19, %c0_20, %c0_21] : memref<1x32x256xf32, #tpu.memory_space<vmem>>, vector<1x32x256xf32>
    %29 = vector.shape_cast %28 : vector<1x32x256xf32> to vector<32x256xf32>
    %30 = vector.shape_cast %27 : vector<32x256xf32> to vector<1x32x256xf32>
    tpu.vector_store %arg6[%c0_19, %c0_20, %c0_21], %30 {strides = array<i32>} : memref<1x32x256xf32, #tpu.memory_space<vmem>>, vector<1x32x256xf32>,
    return
  }
  func.func @transform_0(%arg0: i32) -> (i32, i32, i32) {
    %c0_i32 = arith.constant 0 : i32
    %c0_i32_0 = arith.constant 0 : i32
    %c0_i32_1 = arith.constant 0 : i32
    return %arg0, %c0_i32, %c0_i32_0 : i32, i32, i32
  }
  func.func @transform_1(%arg0: i32) -> (i32, i32) {
    %c0_i32 = arith.constant 0 : i32
    %c0_i32_0 = arith.constant 0 : i32
    %c0_i32_1 = arith.constant 0 : i32
    return %c0_i32, %c0_i32_0 : i32, i32
  }
  func.func @transform_2(%arg0: i32) -> (i32, i32) {
    %c0_i32 = arith.constant 0 : i32
    %c0_i32_0 = arith.constant 0 : i32
    %c0_i32_1 = arith.constant 0 : i32
    return %c0_i32, %c0_i32_0 : i32, i32
  }
  func.func @transform_3(%arg0: i32) -> (i32, i32) {
    %c0_i32 = arith.constant 0 : i32
    %c0_i32_0 = arith.constant 0 : i32
    %c0_i32_1 = arith.constant 0 : i32
    return %c0_i32, %c0_i32_0 : i32, i32
  }
  func.func @transform_4(%arg0: i32) -> (i32, i32) {
    %c0_i32 = arith.constant 0 : i32
    %c0_i32_0 = arith.constant 0 : i32
    %c0_i32_1 = arith.constant 0 : i32
    return %c0_i32, %c0_i32_0 : i32, i32
  }
  func.func @transform_5(%arg0: i32) -> (i32, i32, i32) {
    %c0_i32 = arith.constant 0 : i32
    %c0_i32_0 = arith.constant 0 : i32
    %c0_i32_1 = arith.constant 0 : i32
    return %arg0, %c0_i32, %c0_i32_0 : i32, i32, i32
  }
}

</mosaic_0001>

<llo_original>
// kernel: tpu_custom_call.1
$region0: #{tpu_custom_call.1}
  #allocation0 [shape = 'u32[]', space=smem, size = 0x4, offset = 0x4, fixed_abs, tag = 'smem constant byte address 0x4 - core index']
  #allocation1 [shape = 'u32[72,128]{1,0:T(1,128)}', space=vmem, size = 0x9000, scoped, tag = 'internal scratch']
  %s0 = inlined_call_operand.hbm [shape: f32[2,32,256], index: 0, kind: input, shape index: {}]
  %s1 = inlined_call_operand.vmem [shape: f32[4,32], index: 1, kind: input, shape index: {}]
  %s2 = inlined_call_operand.vmem [shape: f32[32,4], index: 2, kind: input, shape index: {}]
  %s3 = inlined_call_operand.vmem [shape: f32[4,32], index: 3, kind: input, shape index: {}]
  %s4 = inlined_call_operand.vmem [shape: f32[32,4], index: 4, kind: input, shape index: {}]
  %s5 = inlined_call_operand.hbm [shape: f32[2,32,256], index: 5, kind: output, shape index: {}]
  %s6 = sld [smem:[#allocation0]]
  $region57: #{tpu_custom_call.1} parent=0
    _
  %s8 = ssub.s32 1, %s6
  %s9 = scalar_select 0, %s8, %s6
  $region1: #{tpu_custom_call.1} parent=0
    #allocation2 [shape = 'u8[65536]{0}', space=vmem, size = 0x10000, scoped, tag = 'input window, operand 0']
    #allocation3 [shape = 's32[2]{0}', space=sflag, size = 0x8, scoped, tag = 'scoped memory for tpu_custom_call.1']
    #allocation4 [shape = 's32[2]{0}', space=sflag, size = 0x8, scoped, tag = 'scoped memory for tpu_custom_call.1']
    #allocation5 [shape = 'u8[65536]{0}', space=vmem, size = 0x10000, scoped, tag = 'output window, operand 0']
    %10 = vsyncpa [#allocation3], 0
    %s11 = scalar_lea.sflag [#allocation3], 1
    %12 = vsyncpa %s11, 0
    %13 = vsyncpa [#allocation4], 0
    %s14 = scalar_lea.sflag [#allocation4], 1
    %15 = vsyncpa %s14, 0
    loop: start=0, step=1, limit=4
    $region2: #{tpu_custom_call.1} parent=1 // loop_pre_header
      _
    $region3: #{tpu_custom_call.1} parent=1 // loop_header
      %s17 = sphi 0, %s21
      %p18 = scmp.ge.s32.totalorder %s17, 4
      %s27 = sphi 0, %s29
      %s30 = sphi 0, %s27
      %s31 = sphi 0, %s30
      %s47 = sphi 0, %s31
      %s51 = sphi 0, %s51
      %s53 = sphi 0, %s51
      %s54 = sphi 0, %s53
      %s68 = sphi 0, %s54
      %s72 = sphi 0, %s72
      %s74 = sphi 0, %s72
      %s75 = sphi 0, %s74
      %s89 = sphi 0, %s75
      %s93 = sphi 0, %s93
      %s95 = sphi 0, %s93
      %s96 = sphi 0, %s95
      %s110 = sphi 0, %s96
      %s114 = sphi 0, %s114
      %s116 = sphi 0, %s114
      %s117 = sphi 0, %s116
      %s131 = sphi 0, %s117
      %s137 = sphi 0, %s139
      %s140 = sphi 0, %s137
      %s141 = sphi 0, %s140
      %s157 = sphi 0, %s141
    $region4: #{tpu_custom_call.1} parent=1 // loop_header_branch
      %20 = sbr.rel (%p18) target = $region8
    $region5: #{tpu_custom_call.1} parent=1 // loop_body
      %s22 = ssub.s32 %s17, 1
      %s23 = ssub.s32 %s17, 2
      %s24 = sadd.s32 %s17, 1
      %s25 = ssub.s32 %s17, %s24
      %p26 = scmp.eq.s32.totalorder %s25, 0
      %s28 = sadd.s32 %s27, 1
      %s29 = scalar_select %p26, %s27, %s28
      %p32 = pneg %p26
      %p33 = scmp.eq.s32.totalorder %s17, 1
      %p34 = por %p32, %p33
      %p35 = scmp.ne.s32.totalorder %s27, %s30
      %p36 = scmp.eq.s32.totalorder %s17, 0
      %p37 = por %p35, %p36
      %p38 = scmp.ne.s32.totalorder %s27, %s30
      %p39 = scmp.eq.s32.totalorder %s22, 1
      %p40 = por %p38, %p39
      %p41 = scmp.ne.s32.totalorder %s30, %s31
      %p42 = scmp.eq.s32.totalorder %s22, 0
      %p43 = por %p41, %p42
      %p44 = scmp.ne.s32.totalorder %s30, %s31
      %p45 = scmp.eq.s32.totalorder %s23, 1
      %p46 = por %p44, %p45
      %p48 = scmp.ne.s32.totalorder %s31, %s47
      %p49 = scmp.eq.s32.totalorder %s23, 0
      %p50 = por %p48, %p49
      %s52 = sadd.s32 %s51, 1
      %p55 = scmp.eq.s32.totalorder %s17, 1
      %p56 = scmp.ne.s32.totalorder %s51, %s53
      %p57 = scmp.eq.s32.totalorder %s17, 0
      %p58 = por %p56, %p57
      %p59 = scmp.ne.s32.totalorder %s51, %s53
      %p60 = scmp.eq.s32.totalorder %s22, 1
      %p61 = por %p59, %p60
      %p62 = scmp.ne.s32.totalorder %s53, %s54
      %p63 = scmp.eq.s32.totalorder %s22, 0
      %p64 = por %p62, %p63
      %p65 = scmp.ne.s32.totalorder %s53, %s54
      %p66 = scmp.eq.s32.totalorder %s23, 1
      %p67 = por %p65, %p66
      %p69 = scmp.ne.s32.totalorder %s54, %s68
      %p70 = scmp.eq.s32.totalorder %s23, 0
      %p71 = por %p69, %p70
      %s73 = sadd.s32 %s72, 1
      %p76 = scmp.eq.s32.totalorder %s17, 1
      %p77 = scmp.ne.s32.totalorder %s72, %s74
      %p78 = scmp.eq.s32.totalorder %s17, 0
      %p79 = por %p77, %p78
      %p80 = scmp.ne.s32.totalorder %s72, %s74
      %p81 = scmp.eq.s32.totalorder %s22, 1
      %p82 = por %p80, %p81
      %p83 = scmp.ne.s32.totalorder %s74, %s75
      %p84 = scmp.eq.s32.totalorder %s22, 0
      %p85 = por %p83, %p84
      %p86 = scmp.ne.s32.totalorder %s74, %s75
      %p87 = scmp.eq.s32.totalorder %s23, 1
      %p88 = por %p86, %p87
      %p90 = scmp.ne.s32.totalorder %s75, %s89
      %p91 = scmp.eq.s32.totalorder %s23, 0
      %p92 = por %p90, %p91
      %s94 = sadd.s32 %s93, 1
      %p97 = scmp.eq.s32.totalorder %s17, 1
      %p98 = scmp.ne.s32.totalorder %s93, %s95
      %p99 = scmp.eq.s32.totalorder %s17, 0
      %p100 = por %p98, %p99
      %p101 = scmp.ne.s32.totalorder %s93, %s95
      %p102 = scmp.eq.s32.totalorder %s22, 1
      %p103 = por %p101, %p102
      %p104 = scmp.ne.s32.totalorder %s95, %s96
      %p105 = scmp.eq.s32.totalorder %s22, 0
      %p106 = por %p104, %p105
      %p107 = scmp.ne.s32.totalorder %s95, %s96
      %p108 = scmp.eq.s32.totalorder %s23, 1
      %p109 = por %p107, %p108
      %p111 = scmp.ne.s32.totalorder %s96, %s110
      %p112 = scmp.eq.s32.totalorder %s23, 0
      %p113 = por %p111, %p112
      %s115 = sadd.s32 %s114, 1
      %p118 = scmp.eq.s32.totalorder %s17, 1
      %p119 = scmp.ne.s32.totalorder %s114, %s116
      %p120 = scmp.eq.s32.totalorder %s17, 0
      %p121 = por %p119, %p120
      %p122 = scmp.ne.s32.totalorder %s114, %s116
      %p123 = scmp.eq.s32.totalorder %s22, 1
      %p124 = por %p122, %p123
      %p125 = scmp.ne.s32.totalorder %s116, %s117
      %p126 = scmp.eq.s32.totalorder %s22, 0
      %p127 = por %p125, %p126
      %p128 = scmp.ne.s32.totalorder %s116, %s117
      %p129 = scmp.eq.s32.totalorder %s23, 1
      %p130 = por %p128, %p129
      %p132 = scmp.ne.s32.totalorder %s117, %s131
      %p133 = scmp.eq.s32.totalorder %s23, 0
      %p134 = por %p132, %p133
      %s135 = ssub.s32 %s17, %s24
      %p136 = scmp.eq.s32.totalorder %s135, 0
      %s138 = sadd.s32 %s137, 1
      %s139 = scalar_select %p136, %s137, %s138
      %p142 = pneg %p136
      %p143 = scmp.eq.s32.totalorder %s17, 1
      %p144 = por %p142, %p143
      %p145 = scmp.ne.s32.totalorder %s137, %s140
      %p146 = scmp.eq.s32.totalorder %s17, 0
      %p147 = por %p145, %p146
      %p148 = scmp.ne.s32.totalorder %s137, %s140
      %p149 = scmp.eq.s32.totalorder %s22, 1
      %p150 = por %p148, %p149
      %p151 = scmp.ne.s32.totalorder %s140, %s141
      %p152 = scmp.eq.s32.totalorder %s22, 0
      %p153 = por %p151, %p152
      %p154 = scmp.ne.s32.totalorder %s140, %s141
      %p155 = scmp.eq.s32.totalorder %s23, 1
      %p156 = por %p154, %p155
      %p158 = scmp.ne.s32.totalorder %s141, %s157
      %p159 = scmp.eq.s32.totalorder %s23, 0
      %p160 = por %p158, %p159
      %p161 = scmp.le.s32.totalorder 1, %s17
      %p162 = scmp.lt.s32.totalorder %s17, 3
      %p163 = pnand %p161, %p162
      %p164 = pneg %p163
      // Predicated region
      $region9: #{tpu_custom_call.1} parent=5 // pred_check
        _
      $region10: #{tpu_custom_call.1} parent=5 // pred_check_branch
        %166 = sbr.rel (%p163) target = $region12
      $region11: #{tpu_custom_call.1} parent=5 // pred_region
        %s167 = ssub.s32 %s17, 1
        // Predicated region
        $region13: #{tpu_custom_call.1} parent=11 // pred_check
          %p168 = pneg %p64
        $region14: #{tpu_custom_call.1} parent=11 // pred_check_branch
          %170 = sbr.rel (%p168) target = $region16
        $region15: #{tpu_custom_call.1} parent=11 // pred_region
          _
        $region16: #{tpu_custom_call.1} parent=11 // pred_fallthru
          _
        // Predicated region
        $region17: #{tpu_custom_call.1} parent=11 // pred_check
          %p171 = pneg %p85
        $region18: #{tpu_custom_call.1} parent=11 // pred_check_branch
          %173 = sbr.rel (%p171) target = $region20
        $region19: #{tpu_custom_call.1} parent=11 // pred_region
          _
        $region20: #{tpu_custom_call.1} parent=11 // pred_fallthru
          _
        // Predicated region
        $region21: #{tpu_custom_call.1} parent=11 // pred_check
          %p174 = pneg %p106
        $region22: #{tpu_custom_call.1} parent=11 // pred_check_branch
          %176 = sbr.rel (%p174) target = $region24
        $region23: #{tpu_custom_call.1} parent=11 // pred_region
          _
        $region24: #{tpu_custom_call.1} parent=11 // pred_fallthru
          _
        // Predicated region
        $region25: #{tpu_custom_call.1} parent=11 // pred_check
          %p177 = pneg %p127
        $region26: #{tpu_custom_call.1} parent=11 // pred_check_branch
          %179 = sbr.rel (%p177) target = $region28
        $region27: #{tpu_custom_call.1} parent=11 // pred_region
          _
        $region28: #{tpu_custom_call.1} parent=11 // pred_fallthru
          _
      $region12: #{tpu_custom_call.1} parent=5 // pred_fallthru
        _
      %p180 = scmp.lt.s32.totalorder %s17, 2
      // Predicated region
      $region29: #{tpu_custom_call.1} parent=5 // pred_check
        %p181 = pneg %p180
      $region30: #{tpu_custom_call.1} parent=5 // pred_check_branch
        %183 = sbr.rel (%p181) target = $region32
      $region31: #{tpu_custom_call.1} parent=5 // pred_region
        // Predicated region
        $region33: #{tpu_custom_call.1} parent=31 // pred_check
          %p184 = pneg %p37
        $region34: #{tpu_custom_call.1} parent=31 // pred_check_branch
          %186 = sbr.rel (%p184) target = $region36
        $region35: #{tpu_custom_call.1} parent=31 // pred_region
          %s187 = sand.u32 %s27, 1
          %s188 = scalar_lea.sflag [#allocation3], %s187
          %s189 = sand.u32 %s27, 1
          %s190 = smul.addr %s189, 64
          %s191 = scalar_lea.vmem [#allocation2], %s190
          %193 = vsyncadd %s188, 0
          %s194 = smul.addr %s17, 8
          %s195 = smul.addr %s194, 8
          %s196 = scalar_lea.hbm %s0, %s195
          %s197 = sshll.u32 %s196, 4
          %s198 = int_to_ptr.hbm [resolvable:$true] %s197
          %s199 = sshll.u32 %s191, 4
          %s200 = int_to_ptr.vmem [resolvable:$true] %s199
          %205 = dma.hbm_to_vmem [thread:$0]  %s198, 1024, %s200, %s188, 256, 256, 16
        $region36: #{tpu_custom_call.1} parent=31 // pred_fallthru
          _
      $region32: #{tpu_custom_call.1} parent=5 // pred_fallthru
        _
      %p206 = scmp.le.s32.totalorder 1, %s17
      %p207 = scmp.lt.s32.totalorder %s17, 3
      %p208 = pnand %p206, %p207
      %p209 = pneg %p208
      // Predicated region
      $region37: #{tpu_custom_call.1} parent=5 // pred_check
        _
      $region38: #{tpu_custom_call.1} parent=5 // pred_check_branch
        %211 = sbr.rel (%p208) target = $region40
      $region39: #{tpu_custom_call.1} parent=5 // pred_region
        %s212 = ssub.s32 %s17, 1
        %s213 = sand.u32 %s30, 1
        %s214 = scalar_lea.sflag [#allocation3], %s213
        %s215 = sand.u32 %s30, 1
        %s216 = smul.addr %s215, 64
        %s217 = scalar_lea.vmem [#allocation2], %s216
        // Predicated region
        $region41: #{tpu_custom_call.1} parent=39 // pred_check
          %p218 = pneg %p43
        $region42: #{tpu_custom_call.1} parent=39 // pred_check_branch
          %220 = sbr.rel (%p218) target = $region44
        $region43: #{tpu_custom_call.1} parent=39 // pred_region
          %222 = dma.done %s214, 1024
        $region44: #{tpu_custom_call.1} parent=39 // pred_fallthru
          _
        %s223 = sand.u32 %s30, 1
        %s224 = scalar_lea.sflag [#allocation3], %s223
        %s225 = sand.u32 %s30, 1
        %s226 = smul.addr %s225, 64
        %s227 = scalar_lea.vmem [#allocation2], %s226
        %p228 = pneg %p43
        %p229 = pneg %p40
        %p230 = pneg %p64
        %p231 = pneg %p61
        %p232 = pneg %p85
        %p233 = pneg %p82
        %p234 = pneg %p106
        %p235 = pneg %p103
        %p236 = pneg %p127
        %p237 = pneg %p124
        %p238 = pneg %p153
        %p239 = pneg %p150
        %s240 = sand.u32 %s140, 1
        %s241 = scalar_lea.sflag [#allocation4], %s240
        %s242 = sand.u32 %s140, 1
        %s243 = smul.addr %s242, 64
        %s244 = scalar_lea.vmem [#allocation5], %s243
        %v245 = vld [vmem:[%s217] sm:$0xff]
        %v246 = vld [vmem:[%s217 + $0x8] sm:$0xff]
        %v247 = vld [vmem:[%s217 + $0x10] sm:$0xff]
        %v248 = vld [vmem:[%s217 + $0x18] sm:$0xff]
        %v249 = vld [vmem:[%s217 + $0x20] sm:$0xff]
        %v250 = vld [vmem:[%s217 + $0x28] sm:$0xff]
        %v251 = vld [vmem:[%s217 + $0x30] sm:$0xff]
        %v252 = vld [vmem:[%s217 + $0x38] sm:$0xff]
        %v253 = vadd.f32 %v245, %v246
        %254 = vadd.xlane.f32.xlu0 %v253
        %v255 = vpop.xlane.xlu0 %254
        %v256 = vadd.f32 %v247, %v248
        %257 = vadd.xlane.f32.xlu0 %v256
        %v258 = vpop.xlane.xlu0 %257
        %v259 = vadd.f32 %v249, %v250
        %260 = vadd.xlane.f32.xlu0 %v259
        %v261 = vpop.xlane.xlu0 %260
        %v262 = vadd.f32 %v251, %v252
        %263 = vadd.xlane.f32.xlu0 %v262
        %v264 = vpop.xlane.xlu0 %263
        %v265 = vmul.f32 %v255, 0.00390625
        %v266 = vmul.f32 %v258, 0.00390625
        %v267 = vmul.f32 %v261, 0.00390625
        %v268 = vmul.f32 %v264, 0.00390625
        %v269 = vmax.f32 %v245, %v246
        %270 = vmax.xlane.f32.xlu0 %v269
        %v271 = vpop.xlane.xlu0 %270
        %v272 = vmax.f32 %v247, %v248
        %273 = vmax.xlane.f32.xlu0 %v272
        %v274 = vpop.xlane.xlu0 %273
        %v275 = vmax.f32 %v249, %v250
        %276 = vmax.xlane.f32.xlu0 %v275
        %v277 = vpop.xlane.xlu0 %276
        %v278 = vmax.f32 %v251, %v252
        %279 = vmax.xlane.f32.xlu0 %v278
        %v280 = vpop.xlane.xlu0 %279
        %v281 = vld [vmem:[%s1] sm:$0xf]
        %vm282 = vcmask 261120
        %v284 = vsel %vm282, %v281, 0
        %286 = vmatpush.msra.mxu0 0.0
        %287 = vmatpush.msra.mxu0 0.0
        %288 = vmatpush.msra.mxu0 0.0
        %289 = vmatpush.msra.mxu0 0.0
        %290 = vmatpush.msra.mxu0 0.0
        %291 = vmatpush.msra.mxu0 0.0
        %292 = vmatpush.msra.mxu0 0.0
        %293 = vmatpush.msra.mxu0 0.0
        %294 = vmatpush.msra.mxu0 0.0
        %295 = vmatpush.msra.mxu0 0.0
        %296 = vmatpush.msra.mxu0 0.0
        %297 = vmatpush.msra.mxu0 0.0
        %298 = vmatpush.msra.mxu0 %v268
        %299 = vmatpush.msra.mxu0 %v267
        %300 = vmatpush.msra.mxu0 %v266
        %301 = vmatpush.msra.mxu0 %v265
        %302 = vmatmul.f32.gmra.mxu0 %v284
        %v303 = vpop.f32.mrf.mxu0
        %v304 = vadd.f32 0.0, %v303
        %305 = vdwg.mxu0
        %v306 = vmax.f32 %v304, 0.0
        %v307 = vld [vmem:[%s3] sm:$0xf]
        %v309 = vsel %vm282, %v307, 0
        %311 = vmatpush.msra.mxu0 0.0
        %312 = vmatpush.msra.mxu0 0.0
        %313 = vmatpush.msra.mxu0 0.0
        %314 = vmatpush.msra.mxu0 0.0
        %315 = vmatpush.msra.mxu0 0.0
        %316 = vmatpush.msra.mxu0 0.0
        %317 = vmatpush.msra.mxu0 0.0
        %318 = vmatpush.msra.mxu0 0.0
        %319 = vmatpush.msra.mxu0 0.0
        %320 = vmatpush.msra.mxu0 0.0
        %321 = vmatpush.msra.mxu0 0.0
        %322 = vmatpush.msra.mxu0 0.0
        %323 = vmatpush.msra.mxu0 %v280
        %324 = vmatpush.msra.mxu0 %v277
        %325 = vmatpush.msra.mxu0 %v274
        %326 = vmatpush.msra.mxu0 %v271
        %327 = vmatmul.f32.gmra.mxu0 %v309
        %v328 = vpop.f32.mrf.mxu0
        %v329 = vadd.f32 0.0, %v328
        %330 = vdwg.mxu0
        %v331 = vmax.f32 %v329, 0.0
        %v332 = vld [vmem:[%s2] sm:$0xff]
        %v333 = vld [vmem:[%s2 + $0x8] sm:$0xff]
        %v334 = vld [vmem:[%s2 + $0x10] sm:$0xff]
        %v335 = vld [vmem:[%s2 + $0x18] sm:$0xff]
        %v336 = vld [vmem:[%s4] sm:$0xff]
        %v337 = vld [vmem:[%s4 + $0x8] sm:$0xff]
        %v338 = vld [vmem:[%s4 + $0x10] sm:$0xff]
        %v339 = vld [vmem:[%s4 + $0x18] sm:$0xff]
        %vm340 = vcmask 31744
        %v342 = vsel %vm340, %v336, 0
        %v345 = vsel %vm340, %v337, 0
        %v348 = vsel %vm340, %v338, 0
        %v351 = vsel %vm340, %v339, 0
        %vm353 = vcmask 1043456
        %v355 = vsel %vm353, %v331, 0
        %357 = vmatpush.msra.mxu0 0.0
        %358 = vmatpush.msra.mxu0 0.0
        %359 = vmatpush.msra.mxu0 0.0
        %360 = vmatpush.msra.mxu0 0.0
        %361 = vmatpush.msra.mxu0 0.0
        %362 = vmatpush.msra.mxu0 0.0
        %363 = vmatpush.msra.mxu0 0.0
        %364 = vmatpush.msra.mxu0 0.0
        %365 = vmatpush.msra.mxu0 0.0
        %366 = vmatpush.msra.mxu0 0.0
        %367 = vmatpush.msra.mxu0 0.0
        %368 = vmatpush.msra.mxu0 0.0
        %369 = vmatpush.msra.mxu0 0.0
        %370 = vmatpush.msra.mxu0 0.0
        %371 = vmatpush.msra.mxu0 0.0
        %372 = vmatpush.msra.mxu0 %v355
        %373 = vmatmul.f32.gmra.mxu0 %v342
        %v374 = vpop.f32.mrf.mxu0
        %v375 = vadd.f32 0.0, %v374
        %376 = vmatmul.f32.gmra.mxu0 %v345
        %v377 = vpop.f32.mrf.mxu0
        %v378 = vadd.f32 0.0, %v377
        %379 = vmatmul.f32.gmra.mxu0 %v348
        %v380 = vpop.f32.mrf.mxu0
        %v381 = vadd.f32 0.0, %v380
        %382 = vmatmul.f32.gmra.mxu0 %v351
        %v383 = vpop.f32.mrf.mxu0
        %v384 = vadd.f32 0.0, %v383
        %385 = vdwg.mxu0
        %v387 = vsel %vm340, %v332, 0
        %v390 = vsel %vm340, %v333, 0
        %v393 = vsel %vm340, %v334, 0
        %v396 = vsel %vm340, %v335, 0
        %v399 = vsel %vm353, %v306, 0
        %401 = vmatpush.msra.mxu0 0.0
        %402 = vmatpush.msra.mxu0 0.0
        %403 = vmatpush.msra.mxu0 0.0
        %404 = vmatpush.msra.mxu0 0.0
        %405 = vmatpush.msra.mxu0 0.0
        %406 = vmatpush.msra.mxu0 0.0
        %407 = vmatpush.msra.mxu0 0.0
        %408 = vmatpush.msra.mxu0 0.0
        %409 = vmatpush.msra.mxu0 0.0
        %410 = vmatpush.msra.mxu0 0.0
        %411 = vmatpush.msra.mxu0 0.0
        %412 = vmatpush.msra.mxu0 0.0
        %413 = vmatpush.msra.mxu0 0.0
        %414 = vmatpush.msra.mxu0 0.0
        %415 = vmatpush.msra.mxu0 0.0
        %416 = vmatpush.msra.mxu0 %v399
        %417 = vmatmul.f32.gmra.mxu0 %v387
        %v418 = vpop.f32.mrf.mxu0
        %v419 = vadd.f32 %v375, %v418
        %420 = vmatmul.f32.gmra.mxu0 %v390
        %v421 = vpop.f32.mrf.mxu0
        %v422 = vadd.f32 %v378, %v421
        %423 = vmatmul.f32.gmra.mxu0 %v393
        %v424 = vpop.f32.mrf.mxu0
        %v425 = vadd.f32 %v381, %v424
        %426 = vmatmul.f32.gmra.mxu0 %v396
        %v427 = vpop.f32.mrf.mxu0
        %v428 = vadd.f32 %v384, %v427
        %429 = vdwg.mxu0
        %v430 = vxor.u32 %v419, 2147483648
        %v431 = vxor.u32 %v422, 2147483648
        %v432 = vxor.u32 %v425, 2147483648
        %v433 = vxor.u32 %v428, 2147483648
        %v434 = vmul.f32 %v430, 1.442695
        %v435 = vpow.pop %v434
        %v436 = vmul.f32 %v431, 1.442695
        %v437 = vpow.pop %v436
        %v438 = vmul.f32 %v432, 1.442695
        %v439 = vpow.pop %v438
        %v440 = vmul.f32 %v433, 1.442695
        %v441 = vpow.pop %v440
        %v442 = vadd.f32 %v435, 1.0
        %v443 = vadd.f32 %v437, 1.0
        %v444 = vadd.f32 %v439, 1.0
        %v445 = vadd.f32 %v441, 1.0
        %v446 = vrcp.pop %v442
        %v447 = vmul.f32 %v442, %v446
        %v448 = vsub.f32 1.0, %v447
        %v449 = vmul.f32 %v446, %v448
        %v450 = vadd.f32 %v446, %v449
        %vm451 = vweird.f32 %v442
        %vm452 = vweird.f32 %v446
        %vm453 = vmor %vm451, %vm452
        %v454 = vsel %vm453, %v446, %v450
        %v455 = vand.u32 2147483647, %v442
        %vm456 = vcmp.eq.f32.partialorder %v455, 8.507059e+37
        %v457 = vand.u32 %v442, 2147483648
        %v458 = vor.u32 1.1754944e-38, %v457
        %v459 = vsel %vm456, %v458, %v454
        %v460 = vmul.f32 1.0, %v459
        %v461 = vrcp.pop %v443
        %v462 = vmul.f32 %v443, %v461
        %v463 = vsub.f32 1.0, %v462
        %v464 = vmul.f32 %v461, %v463
        %v465 = vadd.f32 %v461, %v464
        %vm466 = vweird.f32 %v443
        %vm467 = vweird.f32 %v461
        %vm468 = vmor %vm466, %vm467
        %v469 = vsel %vm468, %v461, %v465
        %v470 = vand.u32 2147483647, %v443
        %vm471 = vcmp.eq.f32.partialorder %v470, 8.507059e+37
        %v472 = vand.u32 %v443, 2147483648
        %v473 = vor.u32 1.1754944e-38, %v472
        %v474 = vsel %vm471, %v473, %v469
        %v475 = vmul.f32 1.0, %v474
        %v476 = vrcp.pop %v444
        %v477 = vmul.f32 %v444, %v476
        %v478 = vsub.f32 1.0, %v477
        %v479 = vmul.f32 %v476, %v478
        %v480 = vadd.f32 %v476, %v479
        %vm481 = vweird.f32 %v444
        %vm482 = vweird.f32 %v476
        %vm483 = vmor %vm481, %vm482
        %v484 = vsel %vm483, %v476, %v480
        %v485 = vand.u32 2147483647, %v444
        %vm486 = vcmp.eq.f32.partialorder %v485, 8.507059e+37
        %v487 = vand.u32 %v444, 2147483648
        %v488 = vor.u32 1.1754944e-38, %v487
        %v489 = vsel %vm486, %v488, %v484
        %v490 = vmul.f32 1.0, %v489
        %v491 = vrcp.pop %v445
        %v492 = vmul.f32 %v445, %v491
        %v493 = vsub.f32 1.0, %v492
        %v494 = vmul.f32 %v491, %v493
        %v495 = vadd.f32 %v491, %v494
        %vm496 = vweird.f32 %v445
        %vm497 = vweird.f32 %v491
        %vm498 = vmor %vm496, %vm497
        %v499 = vsel %vm498, %v491, %v495
        %v500 = vand.u32 2147483647, %v445
        %vm501 = vcmp.eq.f32.partialorder %v500, 8.507059e+37
        %v502 = vand.u32 %v445, 2147483648
        %v503 = vor.u32 1.1754944e-38, %v502
        %v504 = vsel %vm501, %v503, %v499
        %v505 = vmul.f32 1.0, %v504
        %507 = vset.pattern.permute.xlu0 0
        %508 = vperm.xlu0 %507, %v460
        %v509 = vpop.permute.xlu0 %508
        %512 = vset.pattern.permute.xlu0 0
        %513 = vperm.xlu0 %512, %v475
        %v514 = vpop.permute.xlu0 %513
        %517 = vset.pattern.permute.xlu0 0
        %518 = vperm.xlu0 %517, %v490
        %v519 = vpop.permute.xlu0 %518
        %522 = vset.pattern.permute.xlu0 0
        %523 = vperm.xlu0 %522, %v505
        %v524 = vpop.permute.xlu0 %523
        %v526 = vmul.f32 %v245, %v509
        %v527 = vmul.f32 %v246, %v509
        %v528 = vmul.f32 %v247, %v514
        %v529 = vmul.f32 %v248, %v514
        %v530 = vmul.f32 %v249, %v519
        %v531 = vmul.f32 %v250, %v519
        %v532 = vmul.f32 %v251, %v524
        %v533 = vmul.f32 %v252, %v524
        %534 = vst [vmem:[%s244] sm:$0xff] %v526
        %535 = vst [vmem:[%s244 + $0x8] sm:$0xff] %v527
        %536 = vst [vmem:[%s244 + $0x10] sm:$0xff] %v528
        %537 = vst [vmem:[%s244 + $0x18] sm:$0xff] %v529
        %538 = vst [vmem:[%s244 + $0x20] sm:$0xff] %v530
        %539 = vst [vmem:[%s244 + $0x28] sm:$0xff] %v531
        %540 = vst [vmem:[%s244 + $0x30] sm:$0xff] %v532
        %541 = vst [vmem:[%s244 + $0x38] sm:$0xff] %v533
        %s542 = sand.u32 %s140, 1
        %s543 = scalar_lea.sflag [#allocation4], %s542
        %s544 = sand.u32 %s140, 1
        %s545 = smul.addr %s544, 64
        %s546 = scalar_lea.vmem [#allocation5], %s545
        // Predicated region
        $region45: #{tpu_custom_call.1} parent=39 // pred_check
          %p547 = pneg %p150
        $region46: #{tpu_custom_call.1} parent=39 // pred_check_branch
          %549 = sbr.rel (%p547) target = $region48
        $region47: #{tpu_custom_call.1} parent=39 // pred_region
          %551 = vsyncadd %s543, 0
          %s552 = smul.addr %s22, 8
          %s553 = smul.addr %s552, 8
          %s554 = scalar_lea.hbm %s5, %s553
          %s555 = sshll.u32 %s546, 4
          %s556 = int_to_ptr.vmem [resolvable:$true] %s555
          %s557 = sshll.u32 %s554, 4
          %s558 = int_to_ptr.hbm [resolvable:$true] %s557
          %563 = dma.vmem_to_hbm [thread:$0]  %s556, 1024, %s558, %s543, 256, 256, 16
        $region48: #{tpu_custom_call.1} parent=39 // pred_fallthru
          _
      $region40: #{tpu_custom_call.1} parent=5 // pred_fallthru
        _
      %p564 = scmp.le.s32.totalorder 2, %s17
      // Predicated region
      $region49: #{tpu_custom_call.1} parent=5 // pred_check
        %p565 = pneg %p564
      $region50: #{tpu_custom_call.1} parent=5 // pred_check_branch
        %567 = sbr.rel (%p565) target = $region52
      $region51: #{tpu_custom_call.1} parent=5 // pred_region
        %s568 = ssub.s32 %s17, 2
        // Predicated region
        $region53: #{tpu_custom_call.1} parent=51 // pred_check
          %p569 = pneg %p156
        $region54: #{tpu_custom_call.1} parent=51 // pred_check_branch
          %571 = sbr.rel (%p569) target = $region56
        $region55: #{tpu_custom_call.1} parent=51 // pred_region
          %s572 = sand.u32 %s141, 1
          %s573 = scalar_lea.sflag [#allocation4], %s572
          %s574 = sand.u32 %s141, 1
          %s575 = smul.addr %s574, 64
          %s576 = scalar_lea.vmem [#allocation5], %s575
          %578 = dma.done %s573, 1024
        $region56: #{tpu_custom_call.1} parent=51 // pred_fallthru
          _
      $region52: #{tpu_custom_call.1} parent=5 // pred_fallthru
        _
    $region6: #{tpu_custom_call.1} parent=1 // loop_footer
      %s21 = sadd.s32 1, %s17
    $region7: #{tpu_custom_call.1} parent=1 // loop_footer_branch
      %16 = sbr.rel target = $region3
    $region8: #{tpu_custom_call.1} parent=1 // loop_exit
      _
    %579 = vsyncpa [#allocation3], 1
    %s580 = scalar_lea.sflag [#allocation3], 1
    %581 = vsyncpa %s580, 1
    %582 = vsyncpa [#allocation4], 1
    %s583 = scalar_lea.sflag [#allocation4], 1
    %584 = vsyncpa %s583, 1

</llo_original>
